<compile_context>
chip_gen: v6e
topology: v6e:2x2x1
jax: 0.10.0
libtpu: 0.0.40
codegen_flags: <defaults>
</compile_context>

<pallas_src>
import jax
import jax.numpy as jnp
from jax.experimental import pallas as pl
from jax.experimental.pallas import tpu as pltpu

HIDDEN = 128
LANE = 128
SUBLANE = 8
MAX_TILE_B = 1024       # per review: 512-1024 row tiles; overhead-bound below that
MIN_B_FOR_SPLIT = 512   # v7x: guarantee >=2 grid steps so both TensorCores are fed


def _round_up(n, m):
    return (n + m - 1) // m * m


def _mlp_kernel(x_ref, w1_ref, b1_ref, w2_ref, b2_ref, w3t_ref, b3t_ref, o_ref):
    # Fused 3-layer MLP on one batch tile: bf16 MXU matmuls, f32 accumulation,
    # VPU bias-add + ReLU, sublane-packed lane-dense f32 output store.
    x = x_ref[...].astype(jnp.bfloat16)                      # in-kernel cast (free VPU filler)
    h1 = jnp.dot(x, w1_ref[...], preferred_element_type=jnp.float32)
    h1 = jnp.maximum(h1 + b1_ref[...], 0.0).astype(jnp.bfloat16)
    h2 = jnp.dot(h1, w2_ref[...], preferred_element_type=jnp.float32)
    h2 = jnp.maximum(h2 + b2_ref[...], 0.0).astype(jnp.bfloat16)
    # Last layer computed transposed (NT contraction on the MXU):
    # (act8, hidden) . (tile_b, hidden)^T -> (act8, tile_b)
    out_t = jax.lax.dot_general(
        w3t_ref[...], h2,
        dimension_numbers=(((1,), (1,)), ((), ())),
        preferred_element_type=jnp.float32)
    o_ref[...] = (out_t + b3t_ref[...]).astype(o_ref.dtype)


def _choose_tiling(batch, max_tile=MAX_TILE_B):
    """Pick (tile_b, n_steps, b_pad) minimizing batch padding.

    Choose the step count first (caps padding at one tile's round-up), then the
    tile: multiples of 8 rows when single-step, multiples of 128 when
    multi-step so the (act8, tile_b) output block stays 128-lane aligned.
    For B >= MIN_B_FOR_SPLIT force >= 2 steps (v7x dual-TensorCore)."""
    n_steps = pl.cdiv(batch, max_tile)
    if batch >= MIN_B_FOR_SPLIT and n_steps < 2:
        n_steps = 2
    per_step = pl.cdiv(batch, n_steps)
    tile_b = _round_up(per_step, LANE if n_steps > 1 else SUBLANE)
    return tile_b, n_steps, tile_b * n_steps


def net_forward(x, params, max_tile_b=MAX_TILE_B):
    """x: [B, obs_dim] float32 -> [B, act_dim] float32 Q-values."""
    w1, b1 = params["w1"], params["b1"]
    w2, b2 = params["w2"], params["b2"]
    w3t, b3t = params["w3t"], params["b3t"]     # transposed + sublane-padded last layer
    act_dim = params["act_dim"]

    B, obs_dim = x.shape
    out_rows = w3t.shape[0]                      # act_dim rounded up to 8 sublanes

    tile_b, n_steps, b_pad = _choose_tiling(B, max_tile_b)
    if b_pad != B:                               # only when B isn't tile-aligned
        x = jnp.pad(x, ((0, b_pad - B), (0, 0)))

    # Constant index_map -> weights/biases stay VMEM-resident across grid steps.
    resident = lambda shape: pl.BlockSpec(shape, lambda i: (0, 0))

    out_t = pl.pallas_call(
        _mlp_kernel,
        out_shape=jax.ShapeDtypeStruct((out_rows, b_pad), jnp.float32),
        grid=(n_steps,),
        in_specs=[
            pl.BlockSpec((tile_b, obs_dim), lambda i: (i, 0)),   # x tile walks batch
            resident(w1.shape), resident(b1.shape),
            resident(w2.shape), resident(b2.shape),
            resident(w3t.shape), resident(b3t.shape),
        ],
        out_specs=pl.BlockSpec((out_rows, tile_b), lambda i: (0, i)),
        compiler_params=pltpu.CompilerParams(
            dimension_semantics=("parallel",)),
    )(x, w1, b1, w2, b2, w3t, b3t)

    # Single fused slice+transpose back to the PyTorch (B, act_dim) layout,
    # dropping padded batch columns and padded act rows.
    return out_t[:act_dim, :B].T


def init_params(key, obs_dim, act_dim, hidden=HIDDEN):
    """Synthetic init matching nn.Linear fan-in uniform bounds.

    Layers 1-2 stored [in, out] (transposed vs. PyTorch) in bf16; layer 3 stored
    [out, in] (doubly transposed) and zero-padded to 8 output rows so the kernel
    emits a sublane-packed output.  Biases f32.  f32 masters kept for testing."""
    ks = jax.random.split(key, 6)

    def lin(kw, kb, fan_in, fan_out):
        bound = float(fan_in) ** -0.5
        w = jax.random.uniform(kw, (fan_in, fan_out), jnp.float32, -bound, bound)
        b = jax.random.uniform(kb, (1, fan_out), jnp.float32, -bound, bound)
        return w, b

    w1, b1 = lin(ks[0], ks[1], obs_dim, hidden)
    w2, b2 = lin(ks[2], ks[3], hidden, hidden)
    w3, b3 = lin(ks[4], ks[5], hidden, act_dim)

    out_rows = _round_up(act_dim, SUBLANE)
    w3t = jnp.pad(w3.T, ((0, out_rows - act_dim), (0, 0)))      # (out_rows, hidden)
    b3t = jnp.pad(b3.T, ((0, out_rows - act_dim), (0, 0)))      # (out_rows, 1)

    return dict(
        w1=w1.astype(jnp.bfloat16), b1=b1,
        w2=w2.astype(jnp.bfloat16), b2=b2,
        w3t=w3t.astype(jnp.bfloat16), b3t=b3t,
        act_dim=act_dim,
        f32=dict(w1=w1, b1=b1, w2=w2, b2=b2, w3=w3, b3=b3),
    )


def net_forward_ref(x, p):
    """Pure-JAX reference mirroring the kernel math (bf16 operands, f32 accum)."""
    xb = x.astype(jnp.bfloat16)
    h1 = jnp.maximum(jnp.dot(xb, p["w1"], preferred_element_type=jnp.float32) + p["b1"], 0.0)
    h2 = jnp.maximum(jnp.dot(h1.astype(jnp.bfloat16), p["w2"],
                             preferred_element_type=jnp.float32) + p["b2"], 0.0)
    out_t = jnp.dot(p["w3t"], h2.astype(jnp.bfloat16).T,
                    preferred_element_type=jnp.float32) + p["b3t"]
    return out_t[: p["act_dim"], :].T


def net_forward_ref_f32(x, p):
    """f32 reference matching the PyTorch Net math (validates the bf16 tradeoff)."""
    f = p["f32"]
    h1 = jnp.maximum(x @ f["w1"] + f["b1"], 0.0)
    h2 = jnp.maximum(h1 @ f["w2"] + f["b2"], 0.0)
    return h2 @ f["w3"] + f["b3"]


if __name__ == "__main__":
    key = jax.random.PRNGKey(0)
    k_p, k_x1, k_x2 = jax.random.split(key, 3)

    obs_dim, act_dim = 16, 6                 # small MLP Q-net shapes
    params = init_params(k_p, obs_dim, act_dim)

    # Small batch: single grid step, tile shrinks to the 8-row padded batch.
    batch = 8
    x = jax.random.normal(k_x1, (batch, obs_dim), jnp.float32)
    out = net_forward(x, params)
    jax.block_until_ready(out)
    assert out.shape == (batch, act_dim)
    assert jnp.allclose(out, net_forward_ref(x, params), atol=2e-2, rtol=2e-2), \
        "small-batch mismatch vs. bf16 reference"
    assert jnp.allclose(out, net_forward_ref_f32(x, params), atol=6e-2, rtol=6e-2), \
        "small-batch mismatch vs. f32 reference"

    # Larger non-aligned batch (600 -> 2 grid steps of 384 rows): exercises the
    # forced >=2-step split (v7x both-core path), minimal batch padding, and
    # VMEM-resident weights across grid iterations.
    big_batch = 600
    x_big = jax.random.normal(k_x2, (big_batch, obs_dim), jnp.float32)
    out_big = net_forward(x_big, params)
    jax.block_until_ready(out_big)
    assert out_big.shape == (big_batch, act_dim)
    assert jnp.allclose(out_big, net_forward_ref(x_big, params), atol=2e-2, rtol=2e-2), \
        "big-batch mismatch vs. bf16 reference"
    assert jnp.allclose(out_big, net_forward_ref_f32(x_big, params), atol=6e-2, rtol=6e-2), \
        "big-batch mismatch vs. f32 reference"

    print("KERNEL_OK")
</pallas_src>

<mosaic_0001>
module attributes {stable_mosaic.version = 11 : i64} {
  func.func @_mlp_kernel(%arg0: i32, %arg1: memref<8x16xf32, #tpu.memory_space<vmem>>, %arg2: memref<16x128xbf16, #tpu.memory_space<vmem>>, %arg3: memref<1x128xf32, #tpu.memory_space<vmem>>, %arg4: memref<128x128xbf16, #tpu.memory_space<vmem>>, %arg5: memref<1x128xf32, #tpu.memory_space<vmem>>, %arg6: memref<8x128xbf16, #tpu.memory_space<vmem>>, %arg7: memref<8x1xf32, #tpu.memory_space<vmem>>, %arg8: memref<8x8xf32, #tpu.memory_space<vmem>>) attributes {dimension_semantics = [#tpu.dimension_semantics<parallel>], iteration_bounds = array<i64: 1>, scalar_prefetch = 0 : i64, scratch_operands = 0 : i64, tpu.core_type = #tpu.core_type<tc>, window_params = [{transform_indices = @transform_0, window_bounds = array<i64: 8, 16>}, {pipeline_mode = #tpu.pipeline_mode<synchronous>, transform_indices = @transform_1, window_bounds = array<i64: 16, 128>}, {pipeline_mode = #tpu.pipeline_mode<synchronous>, transform_indices = @transform_2, window_bounds = array<i64: 1, 128>}, {pipeline_mode = #tpu.pipeline_mode<synchronous>, transform_indices = @transform_3, window_bounds = array<i64: 128, 128>}, {pipeline_mode = #tpu.pipeline_mode<synchronous>, transform_indices = @transform_4, window_bounds = array<i64: 1, 128>}, {pipeline_mode = #tpu.pipeline_mode<synchronous>, transform_indices = @transform_5, window_bounds = array<i64: 8, 128>}, {pipeline_mode = #tpu.pipeline_mode<synchronous>, transform_indices = @transform_6, window_bounds = array<i64: 8, 1>}, {transform_indices = @transform_7, window_bounds = array<i64: 8, 8>}]} {
    %c0 = arith.constant 0 : index
    %c0_0 = arith.constant 0 : index
    %0 = vector.load %arg1[%c0, %c0_0] : memref<8x16xf32, #tpu.memory_space<vmem>>, vector<8x16xf32>
    %1 = arith.truncf %0 : vector<8x16xf32> to vector<8x16xbf16>
    %c0_1 = arith.constant 0 : index
    %c0_2 = arith.constant 0 : index
    %2 = vector.load %arg2[%c0_1, %c0_2] : memref<16x128xbf16, #tpu.memory_space<vmem>>, vector<16x128xbf16>
    %cst = arith.constant dense<0.000000e+00> : vector<8x128xf32>
    %3 = tpu.matmul %1, %2, %cst {dimension_numbers = #tpu.dot_dimension_numbers<[1], [0], [0], [1], [0, 0, 1, 1], [], []>} : vector<8x16xbf16>, vector<16x128xbf16>, vector<8x128xf32> -> vector<8x128xf32>
    %c0_3 = arith.constant 0 : index
    %c0_4 = arith.constant 0 : index
    %4 = vector.load %arg3[%c0_3, %c0_4] : memref<1x128xf32, #tpu.memory_space<vmem>>, vector<1x128xf32>
    %5 = vector.broadcast %4 : vector<1x128xf32> to vector<8x128xf32>
    %6 = arith.addf %3, %5 : vector<8x128xf32>
    %cst_5 = arith.constant 0.000000e+00 : f32
    %7 = vector.broadcast %cst_5 : f32 to vector<8x128xf32>
    %8 = arith.maximumf %6, %7 : vector<8x128xf32>
    %9 = arith.truncf %8 : vector<8x128xf32> to vector<8x128xbf16>
    %c0_6 = arith.constant 0 : index
    %c0_7 = arith.constant 0 : index
    %10 = vector.load %arg4[%c0_6, %c0_7] : memref<128x128xbf16, #tpu.memory_space<vmem>>, vector<128x128xbf16>
    %cst_8 = arith.constant dense<0.000000e+00> : vector<8x128xf32>
    %11 = tpu.matmul %9, %10, %cst_8 {dimension_numbers = #tpu.dot_dimension_numbers<[1], [0], [0], [1], [0, 0, 1, 1], [], []>} : vector<8x128xbf16>, vector<128x128xbf16>, vector<8x128xf32> -> vector<8x128xf32>
    %c0_9 = arith.constant 0 : index
    %c0_10 = arith.constant 0 : index
    %12 = vector.load %arg5[%c0_9, %c0_10] : memref<1x128xf32, #tpu.memory_space<vmem>>, vector<1x128xf32>
    %13 = vector.broadcast %12 : vector<1x128xf32> to vector<8x128xf32>
    %14 = arith.addf %11, %13 : vector<8x128xf32>
    %cst_11 = arith.constant 0.000000e+00 : f32
    %15 = vector.broadcast %cst_11 : f32 to vector<8x128xf32>
    %16 = arith.maximumf %14, %15 : vector<8x128xf32>
    %17 = arith.truncf %16 : vector<8x128xf32> to vector<8x128xbf16>
    %c0_12 = arith.constant 0 : index
    %c0_13 = arith.constant 0 : index
    %18 = vector.load %arg6[%c0_12, %c0_13] : memref<8x128xbf16, #tpu.memory_space<vmem>>, vector<8x128xbf16>
    %cst_14 = arith.constant dense<0.000000e+00> : vector<8x8xf32>
    %19 = tpu.matmul %18, %17, %cst_14 {dimension_numbers = #tpu.dot_dimension_numbers<[1], [1], [0], [0], [0, 0, 1, 0], [], []>} : vector<8x128xbf16>, vector<8x128xbf16>, vector<8x8xf32> -> vector<8x8xf32>
    %c0_15 = arith.constant 0 : index
    %c0_16 = arith.constant 0 : index
    %20 = vector.load %arg7[%c0_15, %c0_16] : memref<8x1xf32, #tpu.memory_space<vmem>>, vector<8x1xf32>
    %21 = vector.broadcast %20 : vector<8x1xf32> to vector<8x8xf32>
    %22 = arith.addf %19, %21 : vector<8x8xf32>
    %c0_17 = arith.constant 0 : index
    %c0_18 = arith.constant 0 : index
    %23 = vector.load %arg8[%c0_17, %c0_18] : memref<8x8xf32, #tpu.memory_space<vmem>>, vector<8x8xf32>
    tpu.vector_store %arg8[%c0_17, %c0_18], %22 {strides = array<i32>} : memref<8x8xf32, #tpu.memory_space<vmem>>, vector<8x8xf32>,
    return
  }
  func.func @transform_0(%arg0: i32) -> (i32, i32) {
    %c0_i32 = arith.constant 0 : i32
    %c0_i32_0 = arith.constant 0 : i32
    return %arg0, %c0_i32 : i32, i32
  }
  func.func @transform_1(%arg0: i32) -> (i32, i32) {
    %c0_i32 = arith.constant 0 : i32
    %c0_i32_0 = arith.constant 0 : i32
    %c0_i32_1 = arith.constant 0 : i32
    return %c0_i32, %c0_i32_0 : i32, i32
  }
  func.func @transform_2(%arg0: i32) -> (i32, i32) {
    %c0_i32 = arith.constant 0 : i32
    %c0_i32_0 = arith.constant 0 : i32
    %c0_i32_1 = arith.constant 0 : i32
    return %c0_i32, %c0_i32_0 : i32, i32
  }
  func.func @transform_3(%arg0: i32) -> (i32, i32) {
    %c0_i32 = arith.constant 0 : i32
    %c0_i32_0 = arith.constant 0 : i32
    %c0_i32_1 = arith.constant 0 : i32
    return %c0_i32, %c0_i32_0 : i32, i32
  }
  func.func @transform_4(%arg0: i32) -> (i32, i32) {
    %c0_i32 = arith.constant 0 : i32
    %c0_i32_0 = arith.constant 0 : i32
    %c0_i32_1 = arith.constant 0 : i32
    return %c0_i32, %c0_i32_0 : i32, i32
  }
  func.func @transform_5(%arg0: i32) -> (i32, i32) {
    %c0_i32 = arith.constant 0 : i32
    %c0_i32_0 = arith.constant 0 : i32
    %c0_i32_1 = arith.constant 0 : i32
    return %c0_i32, %c0_i32_0 : i32, i32
  }
  func.func @transform_6(%arg0: i32) -> (i32, i32) {
    %c0_i32 = arith.constant 0 : i32
    %c0_i32_0 = arith.constant 0 : i32
    %c0_i32_1 = arith.constant 0 : i32
    return %c0_i32, %c0_i32_0 : i32, i32
  }
  func.func @transform_7(%arg0: i32) -> (i32, i32) {
    %c0_i32 = arith.constant 0 : i32
    %c0_i32_0 = arith.constant 0 : i32
    return %c0_i32, %arg0 : i32, i32
  }
}

</mosaic_0001>

<llo_original>
// kernel: tpu_custom_call.1
$region0: #{tpu_custom_call.1}
  #allocation0 [shape = 'u32[]', space=smem, size = 0x4, offset = 0x4, fixed_abs, tag = 'smem constant byte address 0x4 - core index']
  #allocation1 [shape = 'u32[144,128]{1,0:T(1,128)}', space=vmem, size = 0x12000, scoped, tag = 'internal scratch']
  %s0 = inlined_call_operand.vmem [shape: f32[8,16], index: 0, kind: input, shape index: {}]
  %s1 = inlined_call_operand.hbm [shape: bf16[16,128], index: 1, kind: input, shape index: {}]
  %s2 = inlined_call_operand.hbm [shape: f32[1,128], index: 2, kind: input, shape index: {}]
  %s3 = inlined_call_operand.hbm [shape: bf16[128,128], index: 3, kind: input, shape index: {}]
  %s4 = inlined_call_operand.vmem [shape: f32[1,128], index: 4, kind: input, shape index: {}]
  %s5 = inlined_call_operand.vmem [shape: bf16[8,128], index: 5, kind: input, shape index: {}]
  %s6 = inlined_call_operand.vmem [shape: f32[8,1], index: 6, kind: input, shape index: {}]
  %s7 = inlined_call_operand.hbm [shape: f32[8,8], index: 7, kind: output, shape index: {}]
  %s8 = sld [smem:[#allocation0]]
  $region50: #{tpu_custom_call.1} parent=0
    _
  %s10 = ssub.s32 1, %s8
  %s11 = scalar_select 0, %s10, %s8
  $region1: #{tpu_custom_call.1} parent=0
    #allocation2 [shape = 'u8[4096]{0}', space=vmem, size = 0x1000, scoped, tag = 'input window, operand 1, single buffered']
    #allocation3 [shape = 's32[1]{0}', space=sflag, size = 0x4, scoped, tag = 'scoped memory for tpu_custom_call.1']
    #allocation4 [shape = 's32[1]{0}', space=sflag, size = 0x4, scoped, tag = 'scoped memory for tpu_custom_call.1']
    #allocation5 [shape = 'u8[512]{0}', space=vmem, size = 0x400, scoped, tag = 'input window, operand 2, single buffered']
    #allocation6 [shape = 's32[1]{0}', space=sflag, size = 0x4, scoped, tag = 'scoped memory for tpu_custom_call.1']
    #allocation7 [shape = 'u8[32768]{0}', space=vmem, size = 0x8000, scoped, tag = 'input window, operand 3, single buffered']
    #allocation8 [shape = 'u8[4096]{0}', space=vmem, size = 0x1000, scoped, tag = 'output window, operand 0, single buffered']
    %12 = vsyncpa [#allocation3], 0
    %13 = vsyncpa [#allocation6], 0
    %14 = vsyncpa [#allocation4], 0
    // Predicated region
    $region2: #{tpu_custom_call.1} parent=1 // pred_check
      _
    $region3: #{tpu_custom_call.1} parent=1 // pred_check_branch
      %16 = sbr.rel (0) target = $region5
    $region4: #{tpu_custom_call.1} parent=1 // pred_region
      _
    $region5: #{tpu_custom_call.1} parent=1 // pred_fallthru
      _
    // Predicated region
    $region6: #{tpu_custom_call.1} parent=1 // pred_check
      _
    $region7: #{tpu_custom_call.1} parent=1 // pred_check_branch
      %18 = sbr.rel (0) target = $region9
    $region8: #{tpu_custom_call.1} parent=1 // pred_region
      %s20 = ssub.s32 128, 128
      %21 = vsyncadd [#allocation3], %s20
      %s22 = sshll.u32 [#allocation2], 4
      %s23 = int_to_ptr.vmem [resolvable:$true] %s22
      %28 = dma.hbm_to_vmem [thread:$0]  %s1, 128, %s23, [#allocation3], 64, 64, 4
    $region9: #{tpu_custom_call.1} parent=1 // pred_fallthru
      _
    // Predicated region
    $region10: #{tpu_custom_call.1} parent=1 // pred_check
      _
    $region11: #{tpu_custom_call.1} parent=1 // pred_check_branch
      %30 = sbr.rel (0) target = $region13
    $region12: #{tpu_custom_call.1} parent=1 // pred_region
      %s32 = ssub.s32 16, 16
      %33 = vsyncadd [#allocation6], %s32
      %s35 = sshll.u32 [#allocation5], 4
      %s36 = int_to_ptr.vmem [resolvable:$true] %s35
      %38 = dma.hbm_to_vmem [thread:$0]  %s2, 16, %s36, [#allocation6]
    $region13: #{tpu_custom_call.1} parent=1 // pred_fallthru
      _
    // Predicated region
    $region14: #{tpu_custom_call.1} parent=1 // pred_check
      _
    $region15: #{tpu_custom_call.1} parent=1 // pred_check_branch
      %40 = sbr.rel (0) target = $region17
    $region16: #{tpu_custom_call.1} parent=1 // pred_region
      %s42 = ssub.s32 1024, 1024
      %43 = vsyncadd [#allocation6], %s42
      %s44 = sshll.u32 [#allocation7], 4
      %s45 = int_to_ptr.vmem [resolvable:$true] %s44
      %50 = dma.hbm_to_vmem [thread:$0]  %s3, 1024, %s45, [#allocation6], 64, 64, 4
    $region17: #{tpu_custom_call.1} parent=1 // pred_fallthru
      _
    // Predicated region
    $region18: #{tpu_custom_call.1} parent=1 // pred_check
      _
    $region19: #{tpu_custom_call.1} parent=1 // pred_check_branch
      %52 = sbr.rel (0) target = $region21
    $region20: #{tpu_custom_call.1} parent=1 // pred_region
      _
    $region21: #{tpu_custom_call.1} parent=1 // pred_fallthru
      _
    // Predicated region
    $region22: #{tpu_custom_call.1} parent=1 // pred_check
      _
    $region23: #{tpu_custom_call.1} parent=1 // pred_check_branch
      %54 = sbr.rel (0) target = $region25
    $region24: #{tpu_custom_call.1} parent=1 // pred_region
      _
    $region25: #{tpu_custom_call.1} parent=1 // pred_fallthru
      _
    // Predicated region
    $region26: #{tpu_custom_call.1} parent=1 // pred_check
      _
    $region27: #{tpu_custom_call.1} parent=1 // pred_check_branch
      %56 = sbr.rel (0) target = $region29
    $region28: #{tpu_custom_call.1} parent=1 // pred_region
      _
    $region29: #{tpu_custom_call.1} parent=1 // pred_fallthru
      _
    // Predicated region
    $region30: #{tpu_custom_call.1} parent=1 // pred_check
      _
    $region31: #{tpu_custom_call.1} parent=1 // pred_check_branch
      %58 = sbr.rel (0) target = $region33
    $region32: #{tpu_custom_call.1} parent=1 // pred_region
      %59 = dma.done [#allocation3], 128
    $region33: #{tpu_custom_call.1} parent=1 // pred_fallthru
      _
    // Predicated region
    $region34: #{tpu_custom_call.1} parent=1 // pred_check
      _
    $region35: #{tpu_custom_call.1} parent=1 // pred_check_branch
      %61 = sbr.rel (0) target = $region37
    $region36: #{tpu_custom_call.1} parent=1 // pred_region
      %62 = dma.done [#allocation6], 16
    $region37: #{tpu_custom_call.1} parent=1 // pred_fallthru
      _
    // Predicated region
    $region38: #{tpu_custom_call.1} parent=1 // pred_check
      _
    $region39: #{tpu_custom_call.1} parent=1 // pred_check_branch
      %64 = sbr.rel (0) target = $region41
    $region40: #{tpu_custom_call.1} parent=1 // pred_region
      %65 = dma.done [#allocation6], 1024
    $region41: #{tpu_custom_call.1} parent=1 // pred_fallthru
      _
    %v67 = vld [vmem:[%s0] sm:$0xff]
    %v68 = vpack.c.bf16 %v67, %v67
    %v69 = vld [vmem:[#allocation2] sm:$0xf]
    %v70 = vld [vmem:[#allocation2 + $0x4] sm:$0xf]
    %v71 = vld [vmem:[#allocation5] sm:$0x1]
    %v73 = vlaneseq
    %v74 = vshrl.u32 %v73, 7
    %v75 = vsub.s32 0, %v74
    %v76 = vrot.slane %v71, %v75
    %v80 = vunpack.c.l.b16 %v69
    %v81 = vunpack.c.l.b16 %v70
    %v82 = vpack.c.b16 %v81, %v80
    %vm84 = vcmask 130048
    %v86 = vsel %vm84, %v68, 0
    %88 = vmatprep.subr.bf16.mxu0 0
    %89 = vmatpush1.bf16.msra.mxu0 0
    %90 = vmatprep.subr.bf16.mxu0 0
    %91 = vmatpush1.bf16.msra.mxu0 0
    %92 = vmatprep.subr.bf16.mxu0 0
    %93 = vmatpush1.bf16.msra.mxu0 0
    %94 = vmatprep.subr.bf16.mxu0 0
    %95 = vmatpush1.bf16.msra.mxu0 0
    %96 = vmatprep.subr.bf16.mxu0 0
    %97 = vmatpush1.bf16.msra.mxu0 0
    %98 = vmatprep.subr.bf16.mxu0 0
    %99 = vmatpush1.bf16.msra.mxu0 0
    %100 = vmatprep.subr.bf16.mxu0 0
    %101 = vmatpush1.bf16.msra.mxu0 0
    %102 = vmatprep.subr.bf16.mxu0 0
    %103 = vmatpush1.bf16.msra.mxu0 %v82
    %104 = vmatprep.subr.bf16.mxu0 0
    %105 = vmatpush2.bf16.msra.mxu0 0
    %106 = vmatprep.subr.bf16.mxu0 0
    %107 = vmatpush2.bf16.msra.mxu0 0
    %108 = vmatprep.subr.bf16.mxu0 0
    %109 = vmatpush2.bf16.msra.mxu0 0
    %110 = vmatprep.subr.bf16.mxu0 0
    %111 = vmatpush2.bf16.msra.mxu0 0
    %112 = vmatprep.subr.bf16.mxu0 0
    %113 = vmatpush2.bf16.msra.mxu0 0
    %114 = vmatprep.subr.bf16.mxu0 0
    %115 = vmatpush2.bf16.msra.mxu0 0
    %116 = vmatprep.subr.bf16.mxu0 0
    %117 = vmatpush2.bf16.msra.mxu0 0
    %118 = vmatprep.subr.bf16.mxu0 0
    %119 = vmatpush2.bf16.msra.mxu0 0
    %120 = vmatprep.mubr.bf16.mxu0 0
    %121 = vmatmul.mubr.bf16.gmra.mxu0 %v86
    %v122 = vpop.f32.mrf.mxu0
    %v123 = vadd.f32 %v76, %v122
    %v124 = vpop.f32.mrf.mxu0
    %v125 = vpop.f32.mrf.mxu0
    %v126 = vpop.f32.mrf.mxu0
    %127 = vdwg.mxu0
    %v128 = vmax.f32 %v123, 0.0
    %v129 = vpack.c.bf16 %v128, %v128
    %v130 = vld [vmem:[#allocation7] sm:$0xf]
    %v131 = vld [vmem:[#allocation7 + $0x4] sm:$0xf]
    %v132 = vld [vmem:[#allocation7 + $0x8] sm:$0xf]
    %v133 = vld [vmem:[#allocation7 + $0xc] sm:$0xf]
    %v134 = vld [vmem:[#allocation7 + $0x10] sm:$0xf]
    %v135 = vld [vmem:[#allocation7 + $0x14] sm:$0xf]
    %v136 = vld [vmem:[#allocation7 + $0x18] sm:$0xf]
    %v137 = vld [vmem:[#allocation7 + $0x1c] sm:$0xf]
    %v138 = vld [vmem:[#allocation7 + $0x20] sm:$0xf]
    %v139 = vld [vmem:[#allocation7 + $0x24] sm:$0xf]
    %v140 = vld [vmem:[#allocation7 + $0x28] sm:$0xf]
    %v141 = vld [vmem:[#allocation7 + $0x2c] sm:$0xf]
    %v142 = vld [vmem:[#allocation7 + $0x30] sm:$0xf]
    %v143 = vld [vmem:[#allocation7 + $0x34] sm:$0xf]
    %v144 = vld [vmem:[#allocation7 + $0x38] sm:$0xf]
    %v145 = vld [vmem:[#allocation7 + $0x3c] sm:$0xf]
    %v146 = vld [vmem:[%s4] sm:$0x1]
    %v148 = vlaneseq
    %v149 = vshrl.u32 %v148, 7
    %v150 = vsub.s32 0, %v149
    %v151 = vrot.slane %v146, %v150
    %v169 = vunpack.c.l.b16 %v130
    %v170 = vunpack.c.l.b16 %v131
    %v171 = vunpack.c.l.b16 %v132
    %v172 = vunpack.c.l.b16 %v133
    %v173 = vunpack.c.l.b16 %v134
    %v174 = vunpack.c.l.b16 %v135
    %v175 = vunpack.c.l.b16 %v136
    %v176 = vunpack.c.l.b16 %v137
    %v177 = vunpack.c.l.b16 %v138
    %v178 = vunpack.c.l.b16 %v139
    %v179 = vunpack.c.l.b16 %v140
    %v180 = vunpack.c.l.b16 %v141
    %v181 = vunpack.c.l.b16 %v142
    %v182 = vunpack.c.l.b16 %v143
    %v183 = vunpack.c.l.b16 %v144
    %v184 = vunpack.c.l.b16 %v145
    %v185 = vpack.c.b16 %v170, %v169
    %v186 = vpack.c.b16 %v172, %v171
    %v187 = vpack.c.b16 %v174, %v173
    %v188 = vpack.c.b16 %v176, %v175
    %v189 = vpack.c.b16 %v178, %v177
    %v190 = vpack.c.b16 %v180, %v179
    %v191 = vpack.c.b16 %v182, %v181
    %v192 = vpack.c.b16 %v184, %v183
    %201 = vmatprep.subr.bf16.mxu0 0
    %202 = vmatpush1.bf16.msra.mxu0 %v192
    %203 = vmatprep.subr.bf16.mxu0 0
    %204 = vmatpush1.bf16.msra.mxu0 %v191
    %205 = vmatprep.subr.bf16.mxu0 0
    %206 = vmatpush1.bf16.msra.mxu0 %v190
    %207 = vmatprep.subr.bf16.mxu0 0
    %208 = vmatpush1.bf16.msra.mxu0 %v189
    %209 = vmatprep.subr.bf16.mxu0 0
    %210 = vmatpush1.bf16.msra.mxu0 %v188
    %211 = vmatprep.subr.bf16.mxu0 0
    %212 = vmatpush1.bf16.msra.mxu0 %v187
    %213 = vmatprep.subr.bf16.mxu0 0
    %214 = vmatpush1.bf16.msra.mxu0 %v186
    %215 = vmatprep.subr.bf16.mxu0 0
    %216 = vmatpush1.bf16.msra.mxu0 %v185
    %217 = vmatprep.subr.bf16.mxu0 0
    %218 = vmatpush2.bf16.msra.mxu0 0
    %219 = vmatprep.subr.bf16.mxu0 0
    %220 = vmatpush2.bf16.msra.mxu0 0
    %221 = vmatprep.subr.bf16.mxu0 0
    %222 = vmatpush2.bf16.msra.mxu0 0
    %223 = vmatprep.subr.bf16.mxu0 0
    %224 = vmatpush2.bf16.msra.mxu0 0
    %225 = vmatprep.subr.bf16.mxu0 0
    %226 = vmatpush2.bf16.msra.mxu0 0
    %227 = vmatprep.subr.bf16.mxu0 0
    %228 = vmatpush2.bf16.msra.mxu0 0
    %229 = vmatprep.subr.bf16.mxu0 0
    %230 = vmatpush2.bf16.msra.mxu0 0
    %231 = vmatprep.subr.bf16.mxu0 0
    %232 = vmatpush2.bf16.msra.mxu0 0
    %233 = vmatprep.mubr.bf16.mxu0 0
    %234 = vmatmul.mubr.bf16.gmra.mxu0 %v129
    %v235 = vpop.f32.mrf.mxu0
    %v236 = vadd.f32 %v151, %v235
    %v237 = vpop.f32.mrf.mxu0
    %v238 = vpop.f32.mrf.mxu0
    %v239 = vpop.f32.mrf.mxu0
    %240 = vdwg.mxu0
    %v241 = vmax.f32 %v236, 0.0
    %v242 = vpack.c.bf16 %v241, %v241
    %v243 = vld [vmem:[%s5] sm:$0xf]
    %v244 = vld [vmem:[%s6] sm:$0xff]
    %246 = vset.pattern.permute.xlu0 0
    %247 = vperm.xlu0 %246, %v244
    %v248 = vpop.permute.xlu0 %247
    %250 = vmatprep.subr.bf16.mxu0 0
    %251 = vmatpush1.bf16.xpose.msra.mxu0 0
    %252 = vmatprep.subr.bf16.mxu0 0
    %253 = vmatpush1.bf16.xpose.msra.mxu0 0
    %254 = vmatprep.subr.bf16.mxu0 0
    %255 = vmatpush1.bf16.xpose.msra.mxu0 0
    %256 = vmatprep.subr.bf16.mxu0 0
    %257 = vmatpush1.bf16.xpose.msra.mxu0 0
    %258 = vmatprep.subr.bf16.mxu0 0
    %259 = vmatpush1.bf16.xpose.msra.mxu0 0
    %260 = vmatprep.subr.bf16.mxu0 0
    %261 = vmatpush1.bf16.xpose.msra.mxu0 0
    %262 = vmatprep.subr.bf16.mxu0 0
    %263 = vmatpush1.bf16.xpose.msra.mxu0 0
    %264 = vmatprep.subr.bf16.mxu0 0
    %265 = vmatpush1.bf16.xpose.msra.mxu0 %v242
    %266 = vmatprep.subr.bf16.mxu0 0
    %267 = vmatpush2.bf16.xpose.msra.mxu0 0
    %268 = vmatprep.subr.bf16.mxu0 0
    %269 = vmatpush2.bf16.xpose.msra.mxu0 0
    %270 = vmatprep.subr.bf16.mxu0 0
    %271 = vmatpush2.bf16.xpose.msra.mxu0 0
    %272 = vmatprep.subr.bf16.mxu0 0
    %273 = vmatpush2.bf16.xpose.msra.mxu0 0
    %274 = vmatprep.subr.bf16.mxu0 0
    %275 = vmatpush2.bf16.xpose.msra.mxu0 0
    %276 = vmatprep.subr.bf16.mxu0 0
    %277 = vmatpush2.bf16.xpose.msra.mxu0 0
    %278 = vmatprep.subr.bf16.mxu0 0
    %279 = vmatpush2.bf16.xpose.msra.mxu0 0
    %280 = vmatprep.subr.bf16.mxu0 0
    %281 = vmatpush2.bf16.xpose.msra.mxu0 0
    %282 = vmatprep.mubr.bf16.mxu0 0
    %283 = vmatmul.mubr.bf16.gmra.mxu0 %v243
    %v284 = vpop.f32.mrf.mxu0
    %v285 = vadd.f32 %v248, %v284
    %v286 = vpop.f32.mrf.mxu0
    %v287 = vpop.f32.mrf.mxu0
    %v288 = vpop.f32.mrf.mxu0
    %289 = vdwg.mxu0
    %vm290 = vcmask 64512
    %291 = vst.msk [vmem:[#allocation8] sm:$0xff] %vm290, %v285
    // Predicated region
    $region42: #{tpu_custom_call.1} parent=1 // pred_check
      _
    $region43: #{tpu_custom_call.1} parent=1 // pred_check_branch
      %293 = sbr.rel (0) target = $region45
    $region44: #{tpu_custom_call.1} parent=1 // pred_region
      %s295 = ssub.s32 128, 128
      %296 = vsyncadd [#allocation4], %s295
      %s298 = sshll.u32 [#allocation8], 4
      %s299 = int_to_ptr.vmem [resolvable:$true] %s298
      %301 = dma.vmem_to_hbm [thread:$0]  %s299, 128, %s7, [#allocation4]
    $region45: #{tpu_custom_call.1} parent=1 // pred_fallthru
      _
    // Predicated region
    $region46: #{tpu_custom_call.1} parent=1 // pred_check
      _
    $region47: #{tpu_custom_call.1} parent=1 // pred_check_branch
      %303 = sbr.rel (0) target = $region49
    $region48: #{tpu_custom_call.1} parent=1 // pred_region
      %304 = dma.done [#allocation4], 128
    $region49: #{tpu_custom_call.1} parent=1 // pred_fallthru
      _
    %305 = vsyncpa [#allocation3], 1
    %306 = vsyncpa [#allocation6], 1
    %307 = vsyncpa [#allocation4], 1

</llo_original>
